<compile_context>
chip_gen: v7x
topology: tpu7x:2x2x1
jax: 0.10.0
libtpu: 0.0.40
codegen_flags: <defaults>
</compile_context>

<pallas_src>
import functools

import jax
import jax.numpy as jnp
from jax.experimental import pallas as pl
from jax.experimental.pallas import tpu as pltpu


_MAX_TILE_B = 1024   # rows per batch tile (>=512-row tiles reach ~85% of HBM roofline)
_MAX_TILE_K = 2048   # D_in tile for the MXU path
_MAX_TILE_N = 256    # D_out tile for the MXU path when D_out is large


def _vmem_budget():
    """Returns (vmem_limit_bytes to request, working-set bytes to size tiles to)."""
    try:
        cap = int(pltpu.get_tpu_info().vmem_capacity_bytes)
    except Exception:
        cap = 128 * 1024 * 1024
    limit = min(48 * 1024 * 1024, (cap * 3) // 4)   # safe on v5e/v6e (128M) and v7x (64M)
    return limit, (limit * 2) // 3                   # leave headroom for compiler scratch


def _pick_tile_b(B, per_row_bytes, fixed_bytes, align, budget):
    """Largest batch tile (multiple of `align`) whose resident footprint fits."""
    fit = max((budget - fixed_bytes) // max(per_row_bytes, 1), 1)
    tile = min(_MAX_TILE_B, B, fit)
    tile = (tile // align) * align
    if tile == 0:
        # Tiny batch: a single full-batch block (exempt from the (8,128) rule);
        # otherwise fall back to the minimum aligned tile.
        tile = B if B < align else align
    return int(tile)


# ---------------------------------------------------------------------------
# Kernels
# ---------------------------------------------------------------------------
def _linreg_dout1_kernel(x_ref, w_ref, b_ref, o_ref):
    # x_ref: (tile_b, D_in) VMEM   w_ref: (1, D_in) VMEM   b_ref: (1, 1) SMEM
    # o_ref: (1, tile_b) VMEM  -- lane-dense output row.
    # w_row . x^T puts the batch dim on lanes, so the store is a dense vst and
    # the HBM write-back is contiguous; f32 accumulation on the MXU.
    y = jax.lax.dot_general(
        w_ref[...], x_ref[...],
        dimension_numbers=(((1,), (1,)), ((), ())),
        preferred_element_type=jnp.float32)               # (1, tile_b)
    o_ref[...] = (y + b_ref[0, 0]).astype(o_ref.dtype)


def _linreg_mxu_kernel(x_ref, w_ref, b_ref, o_ref, acc_ref, *, d_in, tile_k):
    # x_ref: (tile_b, tile_k)   w_ref: (tile_n, tile_k)  (PyTorch [D_out, D_in] layout)
    # b_ref: (1, tile_n) f32    o_ref: (tile_b, tile_n)  acc_ref: f32 scratch
    k = pl.program_id(2)

    @pl.when(k == 0)
    def _():
        acc_ref[...] = jnp.zeros_like(acc_ref)

    x = x_ref[...]
    w = w_ref[...]
    if d_in % tile_k != 0:
        # Ragged last K block: OOB block padding is undefined and feeds a
        # reduction here, so zero-mask both operands (VPU select, hidden by DMA).
        col = jax.lax.broadcasted_iota(jnp.int32, (1, tile_k), 1) + k * tile_k
        valid = col < d_in
        x = jnp.where(valid, x, jnp.zeros_like(x))
        w = jnp.where(valid, w, jnp.zeros_like(w))

    # x @ w^T: contract the trailing D_in dim of both operands directly -- no
    # weight transpose in the wrapper, in HBM, or in the kernel.
    acc_ref[...] += jax.lax.dot_general(
        x, w, dimension_numbers=(((1,), (1,)), ((), ())),
        preferred_element_type=jnp.float32)

    @pl.when(k == pl.num_programs(2) - 1)
    def _():
        o_ref[...] = (acc_ref[...] + b_ref[...]).astype(o_ref.dtype)


# ---------------------------------------------------------------------------
# Wrapper
# ---------------------------------------------------------------------------
def linear_regression_forward(x, w, b=None):
    """y = x @ w^T + b, matching torch.nn.Linear semantics.

    x: [..., D_in]   w: [D_out, D_in] (PyTorch layout)   b: [D_out] or None
    """
    *lead, D_in = x.shape
    D_out = w.shape[0]
    assert w.shape == (D_out, D_in)

    x2 = x.reshape(-1, D_in)
    B = x2.shape[0]
    w = w.astype(x2.dtype)
    if b is None:
        b = jnp.zeros((D_out,), jnp.float32)

    itemsize = x2.dtype.itemsize
    vmem_limit, vmem_work = _vmem_budget()

    if D_out == 1:
        # ---- lane-dense D_out == 1 path (the LinearRegression default) -----
        per_row = 2 * itemsize * D_in + 2 * itemsize       # x (dbl-buffered) + out lane
        fixed = 2 * itemsize * D_in + 4096                 # weight row + SMEM bias pad
        tile_b = _pick_tile_b(B, per_row, fixed, 128, vmem_work)
        grid = (pl.cdiv(B, tile_b),)
        # TODO(synk): K-tile this path too (accumulate over D_in) for extremely
        # large D_in where even a 128-row x tile no longer fits the VMEM limit.
        out = pl.pallas_call(
            _linreg_dout1_kernel,
            out_shape=jax.ShapeDtypeStruct((1, B), x2.dtype),
            grid=grid,
            in_specs=[
                pl.BlockSpec((tile_b, D_in), lambda i: (i, 0)),
                pl.BlockSpec((1, D_in), lambda i: (0, 0)),
                pl.BlockSpec(memory_space=pltpu.MemorySpace.SMEM),
            ],
            out_specs=pl.BlockSpec((1, tile_b), lambda i: (0, i)),
            compiler_params=pltpu.CompilerParams(
                dimension_semantics=("parallel",),
                vmem_limit_bytes=vmem_limit),
        )(x2, w.reshape(1, D_in), b.reshape(1, 1).astype(jnp.float32))
        return out.reshape(*lead, 1)

    # ---- general MXU path (D_out > 1): K/N-tiled, f32 accumulator ----------
    tile_n = D_out if D_out <= 2 * _MAX_TILE_N else _MAX_TILE_N
    tile_k = D_in if D_in <= _MAX_TILE_K else _MAX_TILE_K
    per_row = 2 * itemsize * tile_k + 2 * itemsize * tile_n + 4 * tile_n
    fixed = 2 * itemsize * tile_n * tile_k + 2 * 4 * tile_n
    tile_b = _pick_tile_b(B, per_row, fixed, 8, vmem_work)
    grid = (pl.cdiv(B, tile_b), pl.cdiv(D_out, tile_n), pl.cdiv(D_in, tile_k))

    kernel = functools.partial(_linreg_mxu_kernel, d_in=D_in, tile_k=tile_k)
    # TODO(synk): for small D_out (2..127) the (tile_b, D_out) output still lowers
    # to masked stores; pad D_out to 128 in the wrapper (slice after) if it matters.
    out = pl.pallas_call(
        kernel,
        out_shape=jax.ShapeDtypeStruct((B, D_out), x2.dtype),
        grid=grid,
        in_specs=[
            pl.BlockSpec((tile_b, tile_k), lambda i, j, k: (i, k)),
            pl.BlockSpec((tile_n, tile_k), lambda i, j, k: (j, k)),
            pl.BlockSpec((1, tile_n), lambda i, j, k: (0, j)),
        ],
        out_specs=pl.BlockSpec((tile_b, tile_n), lambda i, j, k: (i, j)),
        scratch_shapes=[pltpu.VMEM((tile_b, tile_n), jnp.float32)],
        compiler_params=pltpu.CompilerParams(
            dimension_semantics=("parallel", "parallel", "arbitrary"),
            vmem_limit_bytes=vmem_limit),
    )(x2, w, b.reshape(1, D_out).astype(jnp.float32))
    return out.reshape(*lead, D_out)


class LinearRegression:
    """Pallas TPU port of the PyTorch module (forward only)."""

    def __init__(self, input_size, output_size=1, bias=True, *, key=None,
                 dtype=jnp.float32):
        key = jax.random.PRNGKey(0) if key is None else key
        kw, kb = jax.random.split(key)
        bound = 1.0 / (input_size ** 0.5)
        # Weight kept in nn.Linear's [D_out, D_in] layout; the kernels contract
        # the trailing D_in dim directly, so no transpose is ever materialized.
        self.weight = jax.random.uniform(kw, (output_size, input_size), dtype,
                                         -bound, bound)
        self.bias = (jax.random.uniform(kb, (output_size,), dtype, -bound, bound)
                     if bias else None)

    def __call__(self, x):
        return linear_regression_forward(x, self.weight, self.bias)


# ---------------------------------------------------------------------------
# Self-test
# ---------------------------------------------------------------------------
if __name__ == "__main__":
    batch, input_size, output_size = 8, 32, 1

    key = jax.random.PRNGKey(0)
    kx, kw, kb = jax.random.split(key, 3)

    # nn.Linear-style uniform(-1/sqrt(fan_in), +1/sqrt(fan_in)) init.
    bound = 1.0 / (input_size ** 0.5)
    w = jax.random.uniform(kw, (output_size, input_size), jnp.float32, -bound, bound)
    b = jax.random.uniform(kb, (output_size,), jnp.float32, -bound, bound)
    x = jax.random.normal(kx, (batch, input_size), jnp.float32)

    # Primary path (output_size = 1, the module default): lane-dense kernel.
    out = jax.block_until_ready(linear_regression_forward(x, w, b))
    ref = x @ w.T + b
    assert out.shape == (batch, output_size)
    assert jnp.allclose(out, ref, atol=1e-5, rtol=1e-5)

    # Secondary sanity check of the K/N-tiled MXU path (output_size > 1).
    d_out2 = 8
    w2 = jax.random.uniform(kw, (d_out2, input_size), jnp.float32, -bound, bound)
    b2 = jax.random.uniform(kb, (d_out2,), jnp.float32, -bound, bound)
    out2 = jax.block_until_ready(linear_regression_forward(x, w2, b2))
    ref2 = x @ w2.T + b2
    assert out2.shape == (batch, d_out2)
    assert jnp.allclose(out2, ref2, atol=1e-5, rtol=1e-5)

    # Class wrapper parity with the PyTorch module.
    model = LinearRegression(input_size, output_size)
    out3 = jax.block_until_ready(model(x))
    ref3 = x @ model.weight.T + model.bias
    assert jnp.allclose(out3, ref3, atol=1e-5, rtol=1e-5)

    print("KERNEL_OK")
</pallas_src>

<mosaic_0001>
module attributes {stable_mosaic.version = 11 : i64} {
  func.func @_linreg_dout1_kernel(%arg0: i32, %arg1: memref<8x32xf32, #tpu.memory_space<vmem>>, %arg2: memref<1x32xf32, #tpu.memory_space<vmem>>, %arg3: memref<1x1xf32, #tpu.memory_space<smem>>, %arg4: memref<1x8xf32, #tpu.memory_space<vmem>>) attributes {dimension_semantics = [#tpu.dimension_semantics<parallel>], iteration_bounds = array<i64: 1>, scalar_prefetch = 0 : i64, scratch_operands = 0 : i64, tpu.core_type = #tpu.core_type<tc>, window_params = [{transform_indices = @transform_0, window_bounds = array<i64: 8, 32>}, {pipeline_mode = #tpu.pipeline_mode<synchronous>, transform_indices = @transform_1, window_bounds = array<i64: 1, 32>}, {transform_indices = @transform_2, window_bounds = array<i64: 1, 1>}, {transform_indices = @transform_3, window_bounds = array<i64: 1, 8>}]} {
    %c0 = arith.constant 0 : index
    %c0_0 = arith.constant 0 : index
    %0 = vector.load %arg2[%c0, %c0_0] : memref<1x32xf32, #tpu.memory_space<vmem>>, vector<1x32xf32>
    %c0_1 = arith.constant 0 : index
    %c0_2 = arith.constant 0 : index
    %1 = vector.load %arg1[%c0_1, %c0_2] : memref<8x32xf32, #tpu.memory_space<vmem>>, vector<8x32xf32>
    %cst = arith.constant dense<0.000000e+00> : vector<1x8xf32>
    %2 = tpu.matmul %0, %1, %cst {dimension_numbers = #tpu.dot_dimension_numbers<[1], [1], [0], [0], [0, 0, 1, 0], [], []>} : vector<1x32xf32>, vector<8x32xf32>, vector<1x8xf32> -> vector<1x8xf32>
    %c0_3 = arith.constant 0 : index
    %c0_4 = arith.constant 0 : index
    %3 = memref.load %arg3[%c0_3, %c0_4] : memref<1x1xf32, #tpu.memory_space<smem>>
    %4 = vector.broadcast %3 : f32 to vector<1x8xf32>
    %5 = arith.addf %2, %4 : vector<1x8xf32>
    %c0_5 = arith.constant 0 : index
    %c0_6 = arith.constant 0 : index
    %6 = vector.load %arg4[%c0_5, %c0_6] : memref<1x8xf32, #tpu.memory_space<vmem>>, vector<1x8xf32>
    tpu.vector_store %arg4[%c0_5, %c0_6], %5 {strides = array<i32>} : memref<1x8xf32, #tpu.memory_space<vmem>>, vector<1x8xf32>,
    return
  }
  func.func @transform_0(%arg0: i32) -> (i32, i32) {
    %c0_i32 = arith.constant 0 : i32
    %c0_i32_0 = arith.constant 0 : i32
    return %arg0, %c0_i32 : i32, i32
  }
  func.func @transform_1(%arg0: i32) -> (i32, i32) {
    %c0_i32 = arith.constant 0 : i32
    %c0_i32_0 = arith.constant 0 : i32
    %c0_i32_1 = arith.constant 0 : i32
    return %c0_i32, %c0_i32_0 : i32, i32
  }
  func.func @transform_2(%arg0: i32) -> (i32, i32) {
    %c0_i32 = arith.constant 0 : i32
    %c0_i32_0 = arith.constant 0 : i32
    %c0_i32_1 = arith.constant 0 : i32
    return %c0_i32, %c0_i32_0 : i32, i32
  }
  func.func @transform_3(%arg0: i32) -> (i32, i32) {
    %c0_i32 = arith.constant 0 : i32
    %c0_i32_0 = arith.constant 0 : i32
    return %c0_i32, %arg0 : i32, i32
  }
}

</mosaic_0001>

<llo_original>
// kernel: tpu_custom_call.1
$region0: #{tpu_custom_call.1}
  #allocation0 [shape = 'u32[]', space=smem, size = 0x4, offset = 0x4, fixed_abs, tag = 'smem constant byte address 0x4 - core index']
  #allocation1 [shape = 'u32[144,128]{1,0:T(1,128)}', space=vmem, size = 0x12000, scoped, tag = 'internal scratch']
  #allocation2 [shape = 'f32[1,1]{1,0:T(1,128)S(6)}', space=smem, size = 0x200, scoped, tag = 'scoped memory for tpu_custom_call.1']
  %s0 = inlined_call_operand.hbm [shape: f32[8,32], index: 0, kind: input, shape index: {}]
  %s1 = inlined_call_operand.vmem [shape: f32[1,32], index: 1, kind: input, shape index: {}]
  %s2 = inlined_call_operand.<no memory space> [shape: f32[1,1], index: 2, kind: input, shape index: {}]
  %s3 = inlined_call_operand.hbm [shape: f32[1,8], index: 3, kind: output, shape index: {}]
  %s4 = sld [smem:[#allocation0]]
  $region26: #{tpu_custom_call.1} parent=0
    _
  %s6 = ssub.s32 1, %s4
  %s7 = scalar_select 0, %s6, %s4
  %8 = sst [smem:[#allocation2]] %s2
  $region1: #{tpu_custom_call.1} parent=0
    #allocation3 [shape = 'u8[4096]{0}', space=vmem, size = 0x1000, scoped, tag = 'input window, operand 0, single buffered']
    #allocation4 [shape = 's32[1]{0}', space=sflag, size = 0x4, scoped, tag = 'scoped memory for tpu_custom_call.1']
    #allocation5 [shape = 's32[1]{0}', space=sflag, size = 0x4, scoped, tag = 'scoped memory for tpu_custom_call.1']
    #allocation6 [shape = 'u8[512]{0}', space=vmem, size = 0x400, scoped, tag = 'output window, operand 0, single buffered']
    %9 = vsyncpa [#allocation4], 0
    %10 = vsyncpa [#allocation5], 0
    // Predicated region
    $region2: #{tpu_custom_call.1} parent=1 // pred_check
      _
    $region3: #{tpu_custom_call.1} parent=1 // pred_check_branch
      %12 = sbr.rel (0) target = $region5
    $region4: #{tpu_custom_call.1} parent=1 // pred_region
      %s14 = ssub.s32 128, 128
      %15 = vsyncadd [#allocation4], %s14
      %s17 = sshll.u32 [#allocation3], 4
      %s18 = int_to_ptr.vmem [resolvable:$true] %s17
      %20 = dma.hbm_to_vmem [thread:$0]  %s0, 128, %s18, [#allocation4]
    $region5: #{tpu_custom_call.1} parent=1 // pred_fallthru
      _
    // Predicated region
    $region6: #{tpu_custom_call.1} parent=1 // pred_check
      _
    $region7: #{tpu_custom_call.1} parent=1 // pred_check_branch
      %22 = sbr.rel (0) target = $region9
    $region8: #{tpu_custom_call.1} parent=1 // pred_region
      _
    $region9: #{tpu_custom_call.1} parent=1 // pred_fallthru
      _
    // Predicated region
    $region10: #{tpu_custom_call.1} parent=1 // pred_check
      _
    $region11: #{tpu_custom_call.1} parent=1 // pred_check_branch
      %24 = sbr.rel (0) target = $region13
    $region12: #{tpu_custom_call.1} parent=1 // pred_region
      _
    $region13: #{tpu_custom_call.1} parent=1 // pred_fallthru
      _
    // Predicated region
    $region14: #{tpu_custom_call.1} parent=1 // pred_check
      _
    $region15: #{tpu_custom_call.1} parent=1 // pred_check_branch
      %26 = sbr.rel (0) target = $region17
    $region16: #{tpu_custom_call.1} parent=1 // pred_region
      %27 = dma.done [#allocation4], 128
    $region17: #{tpu_custom_call.1} parent=1 // pred_fallthru
      _
    %v28 = vld [vmem:[%s1] sm:$0x1]
    %v29 = vld [vmem:[#allocation3] sm:$0xff]
    %s30 = sld [smem:[#allocation2]]
    %v31 = vstv %s30
    %vm32 = vcmask 261120
    %v34 = vsel %vm32, %v28, 0
    %v37 = vsel %vm32, %v29, 0
    %39 = vmatprep.subr.mxu0 0.0
    %40 = vmatpush1.xpose.msra.mxu0 %v37
    %41 = vmatprep.subr.mxu0 0.0
    %42 = vmatpush1.xpose.msra.mxu0 0.0
    %43 = vmatprep.subr.mxu0 0.0
    %44 = vmatpush1.xpose.msra.mxu0 0.0
    %45 = vmatprep.subr.mxu0 0.0
    %46 = vmatpush1.xpose.msra.mxu0 0.0
    %47 = vmatprep.subr.mxu0 0.0
    %48 = vmatpush1.xpose.msra.mxu0 0.0
    %49 = vmatprep.subr.mxu0 0.0
    %50 = vmatpush1.xpose.msra.mxu0 0.0
    %51 = vmatprep.subr.mxu0 0.0
    %52 = vmatpush1.xpose.msra.mxu0 0.0
    %53 = vmatprep.subr.mxu0 0.0
    %54 = vmatpush1.xpose.msra.mxu0 0.0
    %55 = vmatprep.subr.mxu0 0.0
    %56 = vmatpush1.xpose.msra.mxu0 0.0
    %57 = vmatprep.subr.mxu0 0.0
    %58 = vmatpush1.xpose.msra.mxu0 0.0
    %59 = vmatprep.subr.mxu0 0.0
    %60 = vmatpush1.xpose.msra.mxu0 0.0
    %61 = vmatprep.subr.mxu0 0.0
    %62 = vmatpush1.xpose.msra.mxu0 0.0
    %63 = vmatprep.subr.mxu0 0.0
    %64 = vmatpush1.xpose.msra.mxu0 0.0
    %65 = vmatprep.subr.mxu0 0.0
    %66 = vmatpush1.xpose.msra.mxu0 0.0
    %67 = vmatprep.subr.mxu0 0.0
    %68 = vmatpush1.xpose.msra.mxu0 0.0
    %69 = vmatprep.subr.mxu0 0.0
    %70 = vmatpush1.xpose.msra.mxu0 0.0
    %71 = vmatprep.subr.mxu0 0.0
    %72 = vmatpush1.xpose.msra.mxu0 0.0
    %73 = vmatprep.subr.mxu0 0.0
    %74 = vmatpush1.xpose.msra.mxu0 0.0
    %75 = vmatprep.subr.mxu0 0.0
    %76 = vmatpush1.xpose.msra.mxu0 0.0
    %77 = vmatprep.subr.mxu0 0.0
    %78 = vmatpush1.xpose.msra.mxu0 0.0
    %79 = vmatprep.subr.mxu0 0.0
    %80 = vmatpush1.xpose.msra.mxu0 0.0
    %81 = vmatprep.subr.mxu0 0.0
    %82 = vmatpush1.xpose.msra.mxu0 0.0
    %83 = vmatprep.subr.mxu0 0.0
    %84 = vmatpush1.xpose.msra.mxu0 0.0
    %85 = vmatprep.subr.mxu0 0.0
    %86 = vmatpush1.xpose.msra.mxu0 0.0
    %87 = vmatprep.subr.mxu0 0.0
    %88 = vmatpush1.xpose.msra.mxu0 0.0
    %89 = vmatprep.subr.mxu0 0.0
    %90 = vmatpush1.xpose.msra.mxu0 0.0
    %91 = vmatprep.subr.mxu0 0.0
    %92 = vmatpush1.xpose.msra.mxu0 0.0
    %93 = vmatprep.subr.mxu0 0.0
    %94 = vmatpush1.xpose.msra.mxu0 0.0
    %95 = vmatprep.subr.mxu0 0.0
    %96 = vmatpush1.xpose.msra.mxu0 0.0
    %97 = vmatprep.subr.mxu0 0.0
    %98 = vmatpush1.xpose.msra.mxu0 0.0
    %99 = vmatprep.subr.mxu0 0.0
    %100 = vmatpush1.xpose.msra.mxu0 0.0
    %101 = vmatprep.subr.mxu0 0.0
    %102 = vmatpush1.xpose.msra.mxu0 0.0
    %103 = vmatprep.mubr.f32.mxu0 0.0
    %104 = vmatmul.mubr.f32.gmra.mrb[0].mxu0 %v34
    %v105 = vpop.f32.mrb[0].mxu0
    %v106 = vadd.f32 %v31, %v105
    %v107 = vpop.f32.mrb[0].mxu0
    %108 = vdwg.mxu0
    %vm109 = vcmask 57344
    %110 = vst.msk [vmem:[#allocation6] sm:$0x1] %vm109, %v106
    // Predicated region
    $region18: #{tpu_custom_call.1} parent=1 // pred_check
      _
    $region19: #{tpu_custom_call.1} parent=1 // pred_check_branch
      %112 = sbr.rel (0) target = $region21
    $region20: #{tpu_custom_call.1} parent=1 // pred_region
      %s114 = ssub.s32 16, 16
      %115 = vsyncadd [#allocation5], %s114
      %s117 = sshll.u32 [#allocation6], 4
      %s118 = int_to_ptr.vmem [resolvable:$true] %s117
      %120 = dma.vmem_to_hbm [thread:$0]  %s118, 16, %s3, [#allocation5]
    $region21: #{tpu_custom_call.1} parent=1 // pred_fallthru
      _
    // Predicated region
    $region22: #{tpu_custom_call.1} parent=1 // pred_check
      _
    $region23: #{tpu_custom_call.1} parent=1 // pred_check_branch
      %122 = sbr.rel (0) target = $region25
    $region24: #{tpu_custom_call.1} parent=1 // pred_region
      %123 = dma.done [#allocation5], 16
    $region25: #{tpu_custom_call.1} parent=1 // pred_fallthru
      _
    %124 = vsyncpa [#allocation4], 1
    %125 = vsyncpa [#allocation5], 1

</llo_original>
